<compile_context>
chip_gen: v5e
topology: v5e:2x2
jax: 0.10.0
libtpu: 0.0.40
codegen_flags: <defaults>
</compile_context>

<pallas_src>
import functools

import jax
import jax.numpy as jnp
from jax.experimental import pallas as pl
from jax.experimental.pallas import tpu as pltpu


def _interp_kernel(x_ref, o_ref, *, depth, hw):
    # x_ref: (bt, depth*hw)        flattened (D, H, W) per (n, c) row, lane-dense
    # o_ref: (bt, (depth+1)*2*hw)  flattened (2*(D+1), H, W), same row-major layout
    x = x_ref[...]
    for d in range(depth + 1):
        src = min(d, depth - 1)                    # replicate-pad clamp for the extra row
        xd = x[:, src * hw:(src + 1) * hw]         # static 128-lane-aligned slice
        # 2x nearest upsample along depth == duplicate the slice into both lane positions.
        o_ref[:, (2 * d) * hw:(2 * d + 1) * hw] = xd
        o_ref[:, (2 * d + 1) * hw:(2 * d + 2) * hw] = xd


def _reference(x):
    # pure-JAX reference / fallback of the same semantics
    D = x.shape[2]
    src = jnp.minimum(jnp.arange(2 * (D + 1)) // 2, D - 1)
    return x[:, :, src, :, :]


def interpolate_layer2(x, *, target_block_bytes=4 * 1024 * 1024, min_grid_steps=8):
    """x: (N, C, D, H, W) -> (N, C, 2*(D+1), H, W), matching InterpolateLayer2.forward."""
    N, C, D, H, W = x.shape
    B = N * C
    HW = H * W
    D_out = 2 * (D + 1)
    itemsize = jnp.dtype(x.dtype).itemsize

    # Lane-density guard: the kernel relies on HW being a multiple of 128 for unmasked
    # stores and dense DMA; otherwise use the XLA path (still correct, no silent perf trap).
    if HW % 128 != 0:
        return _reference(x)

    in_row = D * HW
    out_row = (D + 1) * 2 * HW
    out_row_bytes = out_row * itemsize

    # Block over B only.  Size blocks for a few MiB of output, then cap bt so the grid has
    # at least `min_grid_steps` steps (software pipelining + v7x dual-TC sharding), and keep
    # bt a multiple of 8 sublanes.
    bt = max(1, min(B, target_block_bytes // max(out_row_bytes, 1)))
    bt = min(bt, pl.cdiv(B, min_grid_steps))
    if B >= 8:
        bt = max(8, (bt // 8) * 8)
    else:
        bt = B
    grid = (pl.cdiv(B, bt),)

    bytes_accessed = B * (in_row + out_row) * itemsize

    # Row-major flatten: (N, C, D, H, W) -> (B, D*HW) — layout bitcast, no relayout copy.
    xb = x.reshape(B, in_row)

    out = pl.pallas_call(
        functools.partial(_interp_kernel, depth=D, hw=HW),
        out_shape=jax.ShapeDtypeStruct((B, out_row), x.dtype),
        grid_spec=pltpu.PrefetchScalarGridSpec(
            num_scalar_prefetch=0,
            grid=grid,
            in_specs=[pl.BlockSpec((bt, in_row), lambda i: (i, 0))],
            out_specs=pl.BlockSpec((bt, out_row), lambda i: (i, 0)),
        ),
        compiler_params=pltpu.CompilerParams(
            dimension_semantics=("parallel",),
            vmem_limit_bytes=32 * 1024 * 1024,
        ),
        cost_estimate=pl.CostEstimate(
            flops=0, transcendentals=0, bytes_accessed=bytes_accessed),
    )(xb)

    # (B, (D+1)*2*HW) is exactly the row-major layout of (N, C, 2*(D+1), H, W) -> free reshape.
    return out.reshape(N, C, D_out, H, W)


if __name__ == "__main__":
    key = jax.random.PRNGKey(0)
    N, C, D, H, W = 2, 4, 8, 8, 16          # B = 64, HW = 128 (lane-dense)
    x = jax.random.normal(key, (N, C, D, H, W), dtype=jnp.float32)

    y = interpolate_layer2(x)
    y = jax.block_until_ready(y)

    y_ref = _reference(x)
    assert y.shape == (N, C, 2 * (D + 1), H, W), y.shape
    assert jnp.allclose(y, y_ref), "mismatch vs reference"

    print("KERNEL_OK")
</pallas_src>

<mosaic_0001>
module attributes {stable_mosaic.version = 11 : i64} {
  func.func @_interp_kernel(%arg0: i32, %arg1: memref<8x1024xf32, #tpu.memory_space<vmem>>, %arg2: memref<8x2304xf32, #tpu.memory_space<vmem>>) attributes {dimension_semantics = [#tpu.dimension_semantics<parallel>], iteration_bounds = array<i64: 1>, scalar_prefetch = 0 : i64, scratch_operands = 0 : i64, tpu.core_type = #tpu.core_type<tc>, window_params = [{transform_indices = @transform_0, window_bounds = array<i64: 8, 1024>}, {transform_indices = @transform_1, window_bounds = array<i64: 8, 2304>}]} {
    %c0 = arith.constant 0 : index
    %c0_0 = arith.constant 0 : index
    %0 = vector.load %arg1[%c0, %c0_0] : memref<8x1024xf32, #tpu.memory_space<vmem>>, vector<8x1024xf32>
    %1 = vector.extract_strided_slice %0 {offsets = [0, 0], sizes = [8, 128], strides = [1, 1]} : vector<8x1024xf32> to vector<8x128xf32>
    %c0_1 = arith.constant 0 : index
    %c0_2 = arith.constant 0 : index
    %2 = vector.load %arg2[%c0_1, %c0_2] : memref<8x2304xf32, #tpu.memory_space<vmem>>, vector<8x128xf32>
    tpu.vector_store %arg2[%c0_1, %c0_2], %1 {strides = array<i32>} : memref<8x2304xf32, #tpu.memory_space<vmem>>, vector<8x128xf32>,
    %c0_3 = arith.constant 0 : index
    %c128 = arith.constant 128 : index
    %3 = vector.load %arg2[%c0_3, %c128] : memref<8x2304xf32, #tpu.memory_space<vmem>>, vector<8x128xf32>
    tpu.vector_store %arg2[%c0_3, %c128], %1 {strides = array<i32>} : memref<8x2304xf32, #tpu.memory_space<vmem>>, vector<8x128xf32>,
    %4 = vector.extract_strided_slice %0 {offsets = [0, 128], sizes = [8, 128], strides = [1, 1]} : vector<8x1024xf32> to vector<8x128xf32>
    %c0_4 = arith.constant 0 : index
    %c256 = arith.constant 256 : index
    %5 = vector.load %arg2[%c0_4, %c256] : memref<8x2304xf32, #tpu.memory_space<vmem>>, vector<8x128xf32>
    tpu.vector_store %arg2[%c0_4, %c256], %4 {strides = array<i32>} : memref<8x2304xf32, #tpu.memory_space<vmem>>, vector<8x128xf32>,
    %c0_5 = arith.constant 0 : index
    %c384 = arith.constant 384 : index
    %6 = vector.load %arg2[%c0_5, %c384] : memref<8x2304xf32, #tpu.memory_space<vmem>>, vector<8x128xf32>
    tpu.vector_store %arg2[%c0_5, %c384], %4 {strides = array<i32>} : memref<8x2304xf32, #tpu.memory_space<vmem>>, vector<8x128xf32>,
    %7 = vector.extract_strided_slice %0 {offsets = [0, 256], sizes = [8, 128], strides = [1, 1]} : vector<8x1024xf32> to vector<8x128xf32>
    %c0_6 = arith.constant 0 : index
    %c512 = arith.constant 512 : index
    %8 = vector.load %arg2[%c0_6, %c512] : memref<8x2304xf32, #tpu.memory_space<vmem>>, vector<8x128xf32>
    tpu.vector_store %arg2[%c0_6, %c512], %7 {strides = array<i32>} : memref<8x2304xf32, #tpu.memory_space<vmem>>, vector<8x128xf32>,
    %c0_7 = arith.constant 0 : index
    %c640 = arith.constant 640 : index
    %9 = vector.load %arg2[%c0_7, %c640] : memref<8x2304xf32, #tpu.memory_space<vmem>>, vector<8x128xf32>
    tpu.vector_store %arg2[%c0_7, %c640], %7 {strides = array<i32>} : memref<8x2304xf32, #tpu.memory_space<vmem>>, vector<8x128xf32>,
    %10 = vector.extract_strided_slice %0 {offsets = [0, 384], sizes = [8, 128], strides = [1, 1]} : vector<8x1024xf32> to vector<8x128xf32>
    %c0_8 = arith.constant 0 : index
    %c768 = arith.constant 768 : index
    %11 = vector.load %arg2[%c0_8, %c768] : memref<8x2304xf32, #tpu.memory_space<vmem>>, vector<8x128xf32>
    tpu.vector_store %arg2[%c0_8, %c768], %10 {strides = array<i32>} : memref<8x2304xf32, #tpu.memory_space<vmem>>, vector<8x128xf32>,
    %c0_9 = arith.constant 0 : index
    %c896 = arith.constant 896 : index
    %12 = vector.load %arg2[%c0_9, %c896] : memref<8x2304xf32, #tpu.memory_space<vmem>>, vector<8x128xf32>
    tpu.vector_store %arg2[%c0_9, %c896], %10 {strides = array<i32>} : memref<8x2304xf32, #tpu.memory_space<vmem>>, vector<8x128xf32>,
    %13 = vector.extract_strided_slice %0 {offsets = [0, 512], sizes = [8, 128], strides = [1, 1]} : vector<8x1024xf32> to vector<8x128xf32>
    %c0_10 = arith.constant 0 : index
    %c1024 = arith.constant 1024 : index
    %14 = vector.load %arg2[%c0_10, %c1024] : memref<8x2304xf32, #tpu.memory_space<vmem>>, vector<8x128xf32>
    tpu.vector_store %arg2[%c0_10, %c1024], %13 {strides = array<i32>} : memref<8x2304xf32, #tpu.memory_space<vmem>>, vector<8x128xf32>,
    %c0_11 = arith.constant 0 : index
    %c1152 = arith.constant 1152 : index
    %15 = vector.load %arg2[%c0_11, %c1152] : memref<8x2304xf32, #tpu.memory_space<vmem>>, vector<8x128xf32>
    tpu.vector_store %arg2[%c0_11, %c1152], %13 {strides = array<i32>} : memref<8x2304xf32, #tpu.memory_space<vmem>>, vector<8x128xf32>,
    %16 = vector.extract_strided_slice %0 {offsets = [0, 640], sizes = [8, 128], strides = [1, 1]} : vector<8x1024xf32> to vector<8x128xf32>
    %c0_12 = arith.constant 0 : index
    %c1280 = arith.constant 1280 : index
    %17 = vector.load %arg2[%c0_12, %c1280] : memref<8x2304xf32, #tpu.memory_space<vmem>>, vector<8x128xf32>
    tpu.vector_store %arg2[%c0_12, %c1280], %16 {strides = array<i32>} : memref<8x2304xf32, #tpu.memory_space<vmem>>, vector<8x128xf32>,
    %c0_13 = arith.constant 0 : index
    %c1408 = arith.constant 1408 : index
    %18 = vector.load %arg2[%c0_13, %c1408] : memref<8x2304xf32, #tpu.memory_space<vmem>>, vector<8x128xf32>
    tpu.vector_store %arg2[%c0_13, %c1408], %16 {strides = array<i32>} : memref<8x2304xf32, #tpu.memory_space<vmem>>, vector<8x128xf32>,
    %19 = vector.extract_strided_slice %0 {offsets = [0, 768], sizes = [8, 128], strides = [1, 1]} : vector<8x1024xf32> to vector<8x128xf32>
    %c0_14 = arith.constant 0 : index
    %c1536 = arith.constant 1536 : index
    %20 = vector.load %arg2[%c0_14, %c1536] : memref<8x2304xf32, #tpu.memory_space<vmem>>, vector<8x128xf32>
    tpu.vector_store %arg2[%c0_14, %c1536], %19 {strides = array<i32>} : memref<8x2304xf32, #tpu.memory_space<vmem>>, vector<8x128xf32>,
    %c0_15 = arith.constant 0 : index
    %c1664 = arith.constant 1664 : index
    %21 = vector.load %arg2[%c0_15, %c1664] : memref<8x2304xf32, #tpu.memory_space<vmem>>, vector<8x128xf32>
    tpu.vector_store %arg2[%c0_15, %c1664], %19 {strides = array<i32>} : memref<8x2304xf32, #tpu.memory_space<vmem>>, vector<8x128xf32>,
    %22 = vector.extract_strided_slice %0 {offsets = [0, 896], sizes = [8, 128], strides = [1, 1]} : vector<8x1024xf32> to vector<8x128xf32>
    %c0_16 = arith.constant 0 : index
    %c1792 = arith.constant 1792 : index
    %23 = vector.load %arg2[%c0_16, %c1792] : memref<8x2304xf32, #tpu.memory_space<vmem>>, vector<8x128xf32>
    tpu.vector_store %arg2[%c0_16, %c1792], %22 {strides = array<i32>} : memref<8x2304xf32, #tpu.memory_space<vmem>>, vector<8x128xf32>,
    %c0_17 = arith.constant 0 : index
    %c1920 = arith.constant 1920 : index
    %24 = vector.load %arg2[%c0_17, %c1920] : memref<8x2304xf32, #tpu.memory_space<vmem>>, vector<8x128xf32>
    tpu.vector_store %arg2[%c0_17, %c1920], %22 {strides = array<i32>} : memref<8x2304xf32, #tpu.memory_space<vmem>>, vector<8x128xf32>,
    %25 = vector.extract_strided_slice %0 {offsets = [0, 896], sizes = [8, 128], strides = [1, 1]} : vector<8x1024xf32> to vector<8x128xf32>
    %c0_18 = arith.constant 0 : index
    %c2048 = arith.constant 2048 : index
    %26 = vector.load %arg2[%c0_18, %c2048] : memref<8x2304xf32, #tpu.memory_space<vmem>>, vector<8x128xf32>
    tpu.vector_store %arg2[%c0_18, %c2048], %25 {strides = array<i32>} : memref<8x2304xf32, #tpu.memory_space<vmem>>, vector<8x128xf32>,
    %c0_19 = arith.constant 0 : index
    %c2176 = arith.constant 2176 : index
    %27 = vector.load %arg2[%c0_19, %c2176] : memref<8x2304xf32, #tpu.memory_space<vmem>>, vector<8x128xf32>
    tpu.vector_store %arg2[%c0_19, %c2176], %25 {strides = array<i32>} : memref<8x2304xf32, #tpu.memory_space<vmem>>, vector<8x128xf32>,
    return
  }
  func.func @transform_0(%arg0: i32) -> (i32, i32) {
    %c0_i32 = arith.constant 0 : i32
    %c0_i32_0 = arith.constant 0 : i32
    return %arg0, %c0_i32 : i32, i32
  }
  func.func @transform_1(%arg0: i32) -> (i32, i32) {
    %c0_i32 = arith.constant 0 : i32
    %c0_i32_0 = arith.constant 0 : i32
    return %arg0, %c0_i32 : i32, i32
  }
}

</mosaic_0001>

<llo_original>
// kernel: tpu_custom_call.1
$region0: #{tpu_custom_call.1}
  #allocation0 [shape = 'u32[]', space=smem, size = 0x4, offset = 0x4, fixed_abs, tag = 'smem constant byte address 0x4 - core index']
  #allocation1 [shape = 'u32[72,128]{1,0:T(1,128)}', space=vmem, size = 0x9000, scoped, tag = 'internal scratch']
  %s0 = inlined_call_operand.hbm [shape: f32[8,1024], index: 0, kind: input, shape index: {}]
  %s1 = inlined_call_operand.hbm [shape: f32[8,2304], index: 1, kind: output, shape index: {}]
  %s2 = sld [smem:[#allocation0]]
  $region18: #{tpu_custom_call.1} parent=0
    _
  %s4 = ssub.s32 1, %s2
  %s5 = scalar_select 0, %s4, %s2
  $region1: #{tpu_custom_call.1} parent=0
    #allocation2 [shape = 'u8[32768]{0}', space=vmem, size = 0x8000, scoped, tag = 'input window, operand 0, single buffered']
    #allocation3 [shape = 's32[1]{0}', space=sflag, size = 0x4, scoped, tag = 'scoped memory for tpu_custom_call.1']
    #allocation4 [shape = 's32[1]{0}', space=sflag, size = 0x4, scoped, tag = 'scoped memory for tpu_custom_call.1']
    #allocation5 [shape = 'u8[73728]{0}', space=vmem, size = 0x12000, scoped, tag = 'output window, operand 0, single buffered']
    %6 = vsyncpa [#allocation3], 0
    %7 = vsyncpa [#allocation4], 0
    // Predicated region
    $region2: #{tpu_custom_call.1} parent=1 // pred_check
      _
    $region3: #{tpu_custom_call.1} parent=1 // pred_check_branch
      %9 = sbr.rel (0) target = $region5
    $region4: #{tpu_custom_call.1} parent=1 // pred_region
      %11 = vsyncadd [#allocation3], 0
      %s13 = sshll.u32 %s0, 4
      %s14 = int_to_ptr.hbm [resolvable:$true] %s13
      %s15 = sshll.u32 [#allocation2], 4
      %s16 = int_to_ptr.vmem [resolvable:$true] %s15
      %18 = dma.hbm_to_vmem [thread:$0]  %s14, 1024, %s16, [#allocation3]
    $region5: #{tpu_custom_call.1} parent=1 // pred_fallthru
      _
    // Predicated region
    $region6: #{tpu_custom_call.1} parent=1 // pred_check
      _
    $region7: #{tpu_custom_call.1} parent=1 // pred_check_branch
      %20 = sbr.rel (0) target = $region9
    $region8: #{tpu_custom_call.1} parent=1 // pred_region
      %22 = dma.done [#allocation3], 1024
    $region9: #{tpu_custom_call.1} parent=1 // pred_fallthru
      _
    %v23 = vld [vmem:[#allocation2] sm:$0xff]
    %v24 = vld [vmem:[#allocation2 + $0x8] sm:$0xff]
    %v25 = vld [vmem:[#allocation2 + $0x10] sm:$0xff]
    %v26 = vld [vmem:[#allocation2 + $0x18] sm:$0xff]
    %v27 = vld [vmem:[#allocation2 + $0x20] sm:$0xff]
    %v28 = vld [vmem:[#allocation2 + $0x28] sm:$0xff]
    %v29 = vld [vmem:[#allocation2 + $0x30] sm:$0xff]
    %v30 = vld [vmem:[#allocation2 + $0x38] sm:$0xff]
    %31 = vst [vmem:[#allocation5] sm:$0xff] %v23
    %32 = vst [vmem:[#allocation5 + $0x8] sm:$0xff] %v23
    %33 = vst [vmem:[#allocation5 + $0x10] sm:$0xff] %v24
    %34 = vst [vmem:[#allocation5 + $0x18] sm:$0xff] %v24
    %35 = vst [vmem:[#allocation5 + $0x20] sm:$0xff] %v25
    %36 = vst [vmem:[#allocation5 + $0x28] sm:$0xff] %v25
    %37 = vst [vmem:[#allocation5 + $0x30] sm:$0xff] %v26
    %38 = vst [vmem:[#allocation5 + $0x38] sm:$0xff] %v26
    %39 = vst [vmem:[#allocation5 + $0x40] sm:$0xff] %v27
    %40 = vst [vmem:[#allocation5 + $0x48] sm:$0xff] %v27
    %41 = vst [vmem:[#allocation5 + $0x50] sm:$0xff] %v28
    %42 = vst [vmem:[#allocation5 + $0x58] sm:$0xff] %v28
    %43 = vst [vmem:[#allocation5 + $0x60] sm:$0xff] %v29
    %44 = vst [vmem:[#allocation5 + $0x68] sm:$0xff] %v29
    %45 = vst [vmem:[#allocation5 + $0x70] sm:$0xff] %v30
    %46 = vst [vmem:[#allocation5 + $0x78] sm:$0xff] %v30
    %47 = vst [vmem:[#allocation5 + $0x80] sm:$0xff] %v30
    %48 = vst [vmem:[#allocation5 + $0x88] sm:$0xff] %v30
    // Predicated region
    $region10: #{tpu_custom_call.1} parent=1 // pred_check
      _
    $region11: #{tpu_custom_call.1} parent=1 // pred_check_branch
      %50 = sbr.rel (0) target = $region13
    $region12: #{tpu_custom_call.1} parent=1 // pred_region
      %52 = vsyncadd [#allocation4], 0
      %s54 = sshll.u32 [#allocation5], 4
      %s55 = int_to_ptr.vmem [resolvable:$true] %s54
      %s56 = sshll.u32 %s1, 4
      %s57 = int_to_ptr.hbm [resolvable:$true] %s56
      %59 = dma.vmem_to_hbm [thread:$0]  %s55, 2304, %s57, [#allocation4]
    $region13: #{tpu_custom_call.1} parent=1 // pred_fallthru
      _
    // Predicated region
    $region14: #{tpu_custom_call.1} parent=1 // pred_check
      _
    $region15: #{tpu_custom_call.1} parent=1 // pred_check_branch
      %61 = sbr.rel (0) target = $region17
    $region16: #{tpu_custom_call.1} parent=1 // pred_region
      %63 = dma.done [#allocation4], 2304
    $region17: #{tpu_custom_call.1} parent=1 // pred_fallthru
      _
    %64 = vsyncpa [#allocation3], 1
    %65 = vsyncpa [#allocation4], 1

</llo_original>
